<compile_context>
chip_gen: v6e
topology: v6e:2x2x1
jax: 0.10.0
libtpu: 0.0.40
codegen_flags: <defaults>
</compile_context>

<pallas_src>
import jax
import jax.numpy as jnp
from jax.experimental import pallas as pl
from jax.experimental.pallas import tpu as pltpu


def _round_up(x, m):
    return ((x + m - 1) // m) * m


def _make_head_kernel(inv_hw):
    def kernel(x_ref, w_ref, b_ref, o_ref, acc_ref):
        # x_ref: [TN, TC, HW]   w_ref: [TC, Kp] (full [C, Kp] when resident)
        # b_ref: [1, Kp]        o_ref: [TN, Kp]   acc_ref: [TN, Kp] f32 scratch
        j = pl.program_id(1)

        @pl.when(j == 0)
        def _init():
            acc_ref[...] = jnp.zeros_like(acc_ref)

        # AdaptiveAvgPool2d((1,1)) == mean over HW.  Sum over the trailing
        # (lane) axis with f32 accumulation; the 1/HW factor is applied once at
        # the end.  Channels stay on lanes -> pooled is MXU-ready.
        pooled = jnp.sum(x_ref[...], axis=-1, dtype=jnp.float32)          # [TN, TC]
        # Partial FC contraction for this channel chunk.  The weight stays in
        # its native dtype (bf16 weights take the fast bf16 MXU path).
        acc_ref[...] += jnp.dot(pooled.astype(w_ref.dtype), w_ref[...],
                                preferred_element_type=jnp.float32)        # [TN, Kp]

        @pl.when(j == pl.num_programs(1) - 1)
        def _finalize():
            out = acc_ref[...] * inv_hw + b_ref[...].astype(jnp.float32)
            o_ref[...] = out.astype(o_ref.dtype)

    return kernel


def _vmem_limit_bytes():
    """Scoped-VMEM limit: ~3/4 of physical capacity (≈48 MiB v7x, ≈96 MiB v5e/v6e)."""
    try:
        cap = int(pltpu.get_tpu_info().vmem_capacity_bytes)
    except Exception:
        cap = 64 << 20  # conservative: assume v7x-sized VMEM
    return min((cap * 3) // 4, 96 << 20)


def resnet_head(x_nchw, weight, bias, *, block_n=None, block_c=None):
    """Forward of ResNetHead.

    x_nchw: [N, C, H, W]; weight: [num_classes, C] (PyTorch Linear layout);
    bias: [num_classes].  Returns [N, num_classes] in x's dtype.
    """
    n, c, h, w = x_nchw.shape
    k = weight.shape[0]
    hw = h * w

    # Free (metadata-only) reshape: keep NCHW and pool over the trailing HW
    # axis in-kernel.  No HBM-level transpose for this memory-bound op.
    x3 = x_nchw.reshape(n, c, hw)

    # Weight to [C, K]; pad the class dim to a multiple of 128 so the output
    # store is lane-dense.  Weight values themselves are untouched.
    kp = _round_up(max(k, 128), 128)
    w_p = jnp.zeros((c, kp), weight.dtype).at[:, :k].set(weight.T)
    b_p = jnp.zeros((1, kp), bias.dtype).at[0, :k].set(bias)

    x_bytes = jnp.dtype(x_nchw.dtype).itemsize
    w_bytes = jnp.dtype(weight.dtype).itemsize
    b_bytes = jnp.dtype(bias.dtype).itemsize
    out_dtype = x_nchw.dtype
    out_bytes = jnp.dtype(out_dtype).itemsize

    vmem_limit = _vmem_limit_bytes()
    headroom = 4 << 20
    hw_pad = _round_up(hw, 128)   # HW is the minor (lane) dim of the x tile in VMEM

    def footprint(tn_, tc_):
        n_c_tiles_ = pl.cdiv(c, tc_)
        w_copies = 1 if n_c_tiles_ == 1 else 2     # resident (single copy) vs pipelined
        return (2 * tn_ * _round_up(tc_, 8) * hw_pad * x_bytes      # x, double-buffered
                + w_copies * _round_up(tc_, 8) * kp * w_bytes       # FC weight
                + 8 * kp * b_bytes                                  # bias (row padded to 8 sublanes)
                + 2 * _round_up(tn_, 8) * kp * out_bytes            # output, double-buffered
                + _round_up(tn_, 8) * kp * 4)                       # f32 accumulator scratch

    # --- channel chunk: fallback reduction tiling for huge HW*C heads --------
    if block_c is None:
        tc = c
        # Halve via power-of-two factors only (TC divides C exactly, so no
        # out-of-bounds channels ever feed the accumulator) until a minimal
        # 8-row batch tile fits the budget.  For normal ResNet heads this loop
        # never runs and the full weight stays resident.
        while (footprint(8, tc) > vmem_limit - headroom
               and tc % 2 == 0 and (tc // 2) % 8 == 0):
            tc //= 2
    else:
        tc = block_c
    n_c_tiles = pl.cdiv(c, tc)

    # --- batch tile: biggest multiple of 8 that fits the VMEM budget ---------
    if block_n is None:
        tn = 8
        while (tn < 512 and tn * 2 <= _round_up(n, 8)
               and footprint(tn * 2, tc) <= vmem_limit - headroom):
            tn *= 2
        if n >= 16:
            # Keep >= 2 batch tiles so the "parallel" axis can feed both v7x
            # TensorCores (harmless on single-core v5e/v6e).
            tn = min(tn, _round_up((n + 1) // 2, 8))
        if tn >= n:
            tn = n   # one tile covering the whole (possibly odd-sized) batch
    else:
        tn = block_n

    grid = (pl.cdiv(n, tn), n_c_tiles)

    # --- BlockSpecs -----------------------------------------------------------
    x_spec = pl.BlockSpec((tn, tc, hw), lambda i, j: (i, j, 0))
    if n_c_tiles == 1:
        # Constant operand: whole array resident in VMEM -> one copy, no
        # per-step DMA, no double buffer.
        w_spec = pl.BlockSpec(memory_space=pltpu.MemorySpace.VMEM)
    else:
        w_spec = pl.BlockSpec((tc, kp), lambda i, j: (j, 0))
    b_spec = pl.BlockSpec(memory_space=pltpu.MemorySpace.VMEM)
    o_spec = pl.BlockSpec((tn, kp), lambda i, j: (i, 0))

    out = pl.pallas_call(
        _make_head_kernel(1.0 / hw),
        out_shape=jax.ShapeDtypeStruct((n, kp), out_dtype),
        grid_spec=pltpu.PrefetchScalarGridSpec(
            num_scalar_prefetch=0,
            grid=grid,
            in_specs=[x_spec, w_spec, b_spec],
            out_specs=o_spec,
            scratch_shapes=[pltpu.VMEM((tn, kp), jnp.float32)],
        ),
        compiler_params=pltpu.CompilerParams(
            dimension_semantics=("parallel", "arbitrary"),
            vmem_limit_bytes=vmem_limit,
        ),
    )(x3, w_p, b_p)

    return out[:, :k]


if __name__ == "__main__":
    # Small shapes consistent with the module: batch=2, channels(=input_features)=32,
    # spatial=8x8, num_classes=10.
    N, C, H, W, NUM_CLASSES = 2, 32, 8, 8, 10

    key = jax.random.PRNGKey(0)
    kx, kw, kb = jax.random.split(key, 3)
    x = jax.random.normal(kx, (N, C, H, W), dtype=jnp.float32)
    # Deterministic Linear params (PyTorch layout: weight [num_classes, in_features]).
    fc_weight = jax.random.normal(kw, (NUM_CLASSES, C), dtype=jnp.float32) * 0.05
    fc_bias = jax.random.normal(kb, (NUM_CLASSES,), dtype=jnp.float32) * 0.05

    out = resnet_head(x, fc_weight, fc_bias)
    out = jax.block_until_ready(out)

    # Reference check in plain JAX (same math as the PyTorch forward).
    ref = jnp.mean(x, axis=(2, 3)) @ fc_weight.T + fc_bias
    assert out.shape == (N, NUM_CLASSES)
    assert jnp.allclose(out, ref, atol=1e-4, rtol=1e-4)

    print("KERNEL_OK")
</pallas_src>

<mosaic_0001>
module attributes {stable_mosaic.version = 11 : i64} {
  func.func @kernel(%arg0: i32, %arg1: i32, %arg2: memref<2x32x64xf32, #tpu.memory_space<vmem>>, %arg3: memref<32x128xf32, #tpu.memory_space<vmem>>, %arg4: memref<1x128xf32, #tpu.memory_space<vmem>>, %arg5: memref<2x128xf32, #tpu.memory_space<vmem>>, %arg6: memref<2x128xf32, #tpu.memory_space<vmem>>) attributes {dimension_semantics = [#tpu.dimension_semantics<parallel>, #tpu.dimension_semantics<arbitrary>], iteration_bounds = array<i64: 1, 1>, scalar_prefetch = 0 : i64, scratch_operands = 1 : i64, tpu.core_type = #tpu.core_type<tc>, window_params = [{transform_indices = @transform_0, window_bounds = array<i64: 2, 32, 64>}, {pipeline_mode = #tpu.pipeline_mode<synchronous>, transform_indices = @transform_1, window_bounds = array<i64: 32, 128>}, {pipeline_mode = #tpu.pipeline_mode<synchronous>, transform_indices = @transform_2, window_bounds = array<i64: 1, 128>}, {transform_indices = @transform_3, window_bounds = array<i64: 2, 128>}]} {
    %c0_i32 = arith.constant 0 : i32
    %0 = arith.cmpi eq, %arg1, %c0_i32 : i32
    %1 = arith.extui %0 : i1 to i32
    %c0_i32_0 = arith.constant 0 : i32
    %2 = arith.cmpi ne, %1, %c0_i32_0 : i32
    scf.if %2 {
      %cst_12 = arith.constant 0.000000e+00 : f32
      %13 = vector.broadcast %cst_12 : f32 to vector<2x128xf32>
      %c0_13 = arith.constant 0 : index
      %c0_14 = arith.constant 0 : index
      %14 = vector.load %arg6[%c0_13, %c0_14] : memref<2x128xf32, #tpu.memory_space<vmem>>, vector<2x128xf32>
      tpu.vector_store %arg6[%c0_13, %c0_14], %13 {strides = array<i32>} : memref<2x128xf32, #tpu.memory_space<vmem>>, vector<2x128xf32>,
    } else {
    }
    %c0 = arith.constant 0 : index
    %c0_1 = arith.constant 0 : index
    %c0_2 = arith.constant 0 : index
    %3 = vector.load %arg2[%c0, %c0_1, %c0_2] : memref<2x32x64xf32, #tpu.memory_space<vmem>>, vector<2x32x64xf32>
    %cst = arith.constant dense<0.000000e+00> : vector<2x32xf32>
    %4 = vector.multi_reduction <add>, %3, %cst [2] : vector<2x32x64xf32> to vector<2x32xf32>
    %c0_3 = arith.constant 0 : index
    %c0_4 = arith.constant 0 : index
    %5 = vector.load %arg6[%c0_3, %c0_4] : memref<2x128xf32, #tpu.memory_space<vmem>>, vector<2x128xf32>
    %c0_5 = arith.constant 0 : index
    %c0_6 = arith.constant 0 : index
    %6 = vector.load %arg3[%c0_5, %c0_6] : memref<32x128xf32, #tpu.memory_space<vmem>>, vector<32x128xf32>
    %cst_7 = arith.constant dense<0.000000e+00> : vector<2x128xf32>
    %7 = tpu.matmul %4, %6, %cst_7 {dimension_numbers = #tpu.dot_dimension_numbers<[1], [0], [0], [1], [0, 0, 1, 1], [], []>} : vector<2x32xf32>, vector<32x128xf32>, vector<2x128xf32> -> vector<2x128xf32>
    %8 = arith.addf %5, %7 : vector<2x128xf32>
    %c0_8 = arith.constant 0 : index
    %c0_9 = arith.constant 0 : index
    %9 = vector.load %arg6[%c0_8, %c0_9] : memref<2x128xf32, #tpu.memory_space<vmem>>, vector<2x128xf32>
    tpu.vector_store %arg6[%c0_8, %c0_9], %8 {strides = array<i32>} : memref<2x128xf32, #tpu.memory_space<vmem>>, vector<2x128xf32>,
    %c0_i32_10 = arith.constant 0 : i32
    %10 = arith.cmpi eq, %arg1, %c0_i32_10 : i32
    %11 = arith.extui %10 : i1 to i32
    %c0_i32_11 = arith.constant 0 : i32
    %12 = arith.cmpi ne, %11, %c0_i32_11 : i32
    scf.if %12 {
      %c0_12 = arith.constant 0 : index
      %c0_13 = arith.constant 0 : index
      %13 = vector.load %arg6[%c0_12, %c0_13] : memref<2x128xf32, #tpu.memory_space<vmem>>, vector<2x128xf32>
      %cst_14 = arith.constant 1.562500e-02 : f32
      %14 = vector.broadcast %cst_14 : f32 to vector<2x128xf32>
      %15 = arith.mulf %13, %14 : vector<2x128xf32>
      %c0_15 = arith.constant 0 : index
      %c0_16 = arith.constant 0 : index
      %16 = vector.load %arg4[%c0_15, %c0_16] : memref<1x128xf32, #tpu.memory_space<vmem>>, vector<1x128xf32>
      %17 = vector.broadcast %16 : vector<1x128xf32> to vector<2x128xf32>
      %18 = arith.addf %15, %17 : vector<2x128xf32>
      %c0_17 = arith.constant 0 : index
      %c0_18 = arith.constant 0 : index
      %19 = vector.load %arg5[%c0_17, %c0_18] : memref<2x128xf32, #tpu.memory_space<vmem>>, vector<2x128xf32>
      tpu.vector_store %arg5[%c0_17, %c0_18], %18 {strides = array<i32>} : memref<2x128xf32, #tpu.memory_space<vmem>>, vector<2x128xf32>,
    } else {
    }
    return
  }
  func.func @transform_0(%arg0: i32, %arg1: i32) -> (i32, i32, i32) {
    %c0_i32 = arith.constant 0 : i32
    %c0_i32_0 = arith.constant 0 : i32
    return %arg0, %arg1, %c0_i32 : i32, i32, i32
  }
  func.func @transform_1(%arg0: i32, %arg1: i32) -> (i32, i32) {
    %c0_i32 = arith.constant 0 : i32
    %c0_i32_0 = arith.constant 0 : i32
    %c0_i32_1 = arith.constant 0 : i32
    return %c0_i32, %c0_i32_0 : i32, i32
  }
  func.func @transform_2(%arg0: i32, %arg1: i32) -> (i32, i32) {
    %c0_i32 = arith.constant 0 : i32
    %c0_i32_0 = arith.constant 0 : i32
    %c0_i32_1 = arith.constant 0 : i32
    return %c0_i32, %c0_i32_0 : i32, i32
  }
  func.func @transform_3(%arg0: i32, %arg1: i32) -> (i32, i32) {
    %c0_i32 = arith.constant 0 : i32
    %c0_i32_0 = arith.constant 0 : i32
    return %arg0, %c0_i32 : i32, i32
  }
}

</mosaic_0001>

<llo_original>
// kernel: tpu_custom_call.1
$region0: #{tpu_custom_call.1}
  #allocation0 [shape = 'u32[]', space=smem, size = 0x4, offset = 0x4, fixed_abs, tag = 'smem constant byte address 0x4 - core index']
  #allocation1 [shape = 'u32[144,128]{1,0:T(1,128)}', space=vmem, size = 0x12000, scoped, tag = 'internal scratch']
  #allocation2 [shape = 'f32[2,128]{1,0:T(2,128)}', space=vmem, size = 0x400, scoped, tag = 'scratch operand']
  %s0 = inlined_call_operand.hbm [shape: f32[2,32,64], index: 0, kind: input, shape index: {}]
  %s1 = inlined_call_operand.hbm [shape: f32[32,128], index: 1, kind: input, shape index: {}]
  %s2 = inlined_call_operand.vmem [shape: f32[1,128], index: 2, kind: input, shape index: {}]
  %s3 = inlined_call_operand.hbm [shape: f32[2,128], index: 3, kind: output, shape index: {}]
  %s4 = sld [smem:[#allocation0]]
  $region38: #{tpu_custom_call.1} parent=0
    _
  %s6 = ssub.s32 1, %s4
  %s7 = scalar_select 0, %s6, %s4
  $region1: #{tpu_custom_call.1} parent=0
    #allocation3 [shape = 'u8[32768]{0}', space=vmem, size = 0x8000, scoped, tag = 'input window, operand 0, single buffered']
    #allocation4 [shape = 's32[1]{0}', space=sflag, size = 0x4, scoped, tag = 'scoped memory for tpu_custom_call.1']
    #allocation5 [shape = 's32[1]{0}', space=sflag, size = 0x4, scoped, tag = 'scoped memory for tpu_custom_call.1']
    #allocation6 [shape = 'u8[16384]{0}', space=vmem, size = 0x4000, scoped, tag = 'input window, operand 1, single buffered']
    #allocation7 [shape = 's32[1]{0}', space=sflag, size = 0x4, scoped, tag = 'scoped memory for tpu_custom_call.1']
    #allocation8 [shape = 'u8[1024]{0}', space=vmem, size = 0x400, scoped, tag = 'output window, operand 0, single buffered']
    %8 = vsyncpa [#allocation4], 0
    %9 = vsyncpa [#allocation7], 0
    %10 = vsyncpa [#allocation5], 0
    // Predicated region
    $region2: #{tpu_custom_call.1} parent=1 // pred_check
      _
    $region3: #{tpu_custom_call.1} parent=1 // pred_check_branch
      %12 = sbr.rel (0) target = $region5
    $region4: #{tpu_custom_call.1} parent=1 // pred_region
      %s14 = ssub.s32 1024, 1024
      %15 = vsyncadd [#allocation4], %s14
      %s16 = sshll.u32 [#allocation3], 4
      %s17 = int_to_ptr.vmem [resolvable:$true] %s16
      %22 = dma.hbm_to_vmem [thread:$0]  %s0, 1024, %s17, [#allocation4], 128, 128, 8
    $region5: #{tpu_custom_call.1} parent=1 // pred_fallthru
      _
    // Predicated region
    $region6: #{tpu_custom_call.1} parent=1 // pred_check
      _
    $region7: #{tpu_custom_call.1} parent=1 // pred_check_branch
      %24 = sbr.rel (0) target = $region9
    $region8: #{tpu_custom_call.1} parent=1 // pred_region
      %s26 = ssub.s32 512, 512
      %27 = vsyncadd [#allocation7], %s26
      %s28 = sshll.u32 [#allocation6], 4
      %s29 = int_to_ptr.vmem [resolvable:$true] %s28
      %34 = dma.hbm_to_vmem [thread:$0]  %s1, 512, %s29, [#allocation7], 128, 128, 8
    $region9: #{tpu_custom_call.1} parent=1 // pred_fallthru
      _
    // Predicated region
    $region10: #{tpu_custom_call.1} parent=1 // pred_check
      _
    $region11: #{tpu_custom_call.1} parent=1 // pred_check_branch
      %36 = sbr.rel (0) target = $region13
    $region12: #{tpu_custom_call.1} parent=1 // pred_region
      _
    $region13: #{tpu_custom_call.1} parent=1 // pred_fallthru
      _
    // Predicated region
    $region14: #{tpu_custom_call.1} parent=1 // pred_check
      _
    $region15: #{tpu_custom_call.1} parent=1 // pred_check_branch
      %38 = sbr.rel (0) target = $region17
    $region16: #{tpu_custom_call.1} parent=1 // pred_region
      %39 = dma.done [#allocation4], 1024
    $region17: #{tpu_custom_call.1} parent=1 // pred_fallthru
      _
    // Predicated region
    $region18: #{tpu_custom_call.1} parent=1 // pred_check
      _
    $region19: #{tpu_custom_call.1} parent=1 // pred_check_branch
      %41 = sbr.rel (0) target = $region21
    $region20: #{tpu_custom_call.1} parent=1 // pred_region
      %42 = dma.done [#allocation7], 512
    $region21: #{tpu_custom_call.1} parent=1 // pred_fallthru
      _
    %p43 = scmp.eq.s32.totalorder 0, 0
    // Predicated region
    $region22: #{tpu_custom_call.1} parent=1 // pred_check
      %p44 = pneg %p43
    $region23: #{tpu_custom_call.1} parent=1 // pred_check_branch
      %46 = sbr.rel (%p44) target = $region25
    $region24: #{tpu_custom_call.1} parent=1 // pred_region
      %47 = vst [vmem:[#allocation2] sm:$0x3] 0.0
    $region25: #{tpu_custom_call.1} parent=1 // pred_fallthru
      _
    %v48 = vld [vmem:[#allocation3] sm:$0xff]
    %v49 = vld [vmem:[#allocation3 + $0x8] sm:$0xff]
    %v50 = vld [vmem:[#allocation3 + $0x10] sm:$0xff]
    %v51 = vld [vmem:[#allocation3 + $0x18] sm:$0xff]
    %v52 = vld [vmem:[#allocation3 + $0x20] sm:$0xff]
    %v53 = vld [vmem:[#allocation3 + $0x28] sm:$0xff]
    %v54 = vld [vmem:[#allocation3 + $0x30] sm:$0xff]
    %v55 = vld [vmem:[#allocation3 + $0x38] sm:$0xff]
    %vm56 = vcmask 523264
    %v57 = vsel %vm56, %v48, 0.0
    %58 = vadd.xlane.f32.xlu0 %v57
    %v59 = vpop.xlane.xlu0 %58
    %v60 = vsel %vm56, %v49, 0.0
    %61 = vadd.xlane.f32.xlu0 %v60
    %v62 = vpop.xlane.xlu0 %61
    %v63 = vsel %vm56, %v50, 0.0
    %64 = vadd.xlane.f32.xlu0 %v63
    %v65 = vpop.xlane.xlu0 %64
    %v66 = vsel %vm56, %v51, 0.0
    %67 = vadd.xlane.f32.xlu0 %v66
    %v68 = vpop.xlane.xlu0 %67
    %v69 = vsel %vm56, %v52, 0.0
    %70 = vadd.xlane.f32.xlu0 %v69
    %v71 = vpop.xlane.xlu0 %70
    %v72 = vsel %vm56, %v53, 0.0
    %73 = vadd.xlane.f32.xlu0 %v72
    %v74 = vpop.xlane.xlu0 %73
    %v75 = vsel %vm56, %v54, 0.0
    %76 = vadd.xlane.f32.xlu0 %v75
    %v77 = vpop.xlane.xlu0 %76
    %v78 = vsel %vm56, %v55, 0.0
    %79 = vadd.xlane.f32.xlu0 %v78
    %v80 = vpop.xlane.xlu0 %79
    %v81 = vld [vmem:[#allocation2] sm:$0x3]
    %v82 = vld [vmem:[#allocation6] sm:$0xff]
    %v83 = vld [vmem:[#allocation6 + $0x8] sm:$0xff]
    %v84 = vld [vmem:[#allocation6 + $0x10] sm:$0xff]
    %v85 = vld [vmem:[#allocation6 + $0x18] sm:$0xff]
    %v94 = vlaneseq
    %v95 = vand.u32 %v94, 127
    %v96 = vlaneseq
    %v97 = vshrl.u32 %v96, 7
    %v98 = vsub.s32 %v95, %v97
    %v99 = vrot.slane %v59, %v98
    %v100 = vadd.s32 %v95, 4294967288
    %v101 = vlaneseq
    %v102 = vshrl.u32 %v101, 7
    %v103 = vsub.s32 %v100, %v102
    %v104 = vrot.slane %v62, %v103
    %vm105 = vcmask 130112
    %v106 = vsel %vm105, %v104, %v99
    %v107 = vadd.s32 %v95, 4294967280
    %v108 = vlaneseq
    %v109 = vshrl.u32 %v108, 7
    %v110 = vsub.s32 %v107, %v109
    %v111 = vrot.slane %v65, %v110
    %vm112 = vcmask 195712
    %v113 = vsel %vm112, %v111, %v106
    %v114 = vadd.s32 %v95, 4294967272
    %v115 = vlaneseq
    %v116 = vshrl.u32 %v115, 7
    %v117 = vsub.s32 %v114, %v116
    %v118 = vrot.slane %v68, %v117
    %vm119 = vcmask 261312
    %v120 = vsel %vm119, %v118, %v113
    %v121 = vlaneseq
    %v122 = vshrl.u32 %v121, 7
    %v123 = vsub.s32 %v95, %v122
    %v124 = vrot.slane %v71, %v123
    %v125 = vlaneseq
    %v126 = vshrl.u32 %v125, 7
    %v127 = vsub.s32 %v100, %v126
    %v128 = vrot.slane %v74, %v127
    %v129 = vsel %vm105, %v128, %v124
    %v130 = vlaneseq
    %v131 = vshrl.u32 %v130, 7
    %v132 = vsub.s32 %v107, %v131
    %v133 = vrot.slane %v77, %v132
    %v134 = vsel %vm112, %v133, %v129
    %v135 = vlaneseq
    %v136 = vshrl.u32 %v135, 7
    %v137 = vsub.s32 %v114, %v136
    %v138 = vrot.slane %v80, %v137
    %v139 = vsel %vm119, %v138, %v134
    %vm140 = vcmask 1041409
    %v141 = vsel %vm140, %v139, %v120
    %vm142 = vcmask 261120
    %v143 = vsel %vm142, %v141, 0
    %145 = vmatprep.subr.mxu0 0.0
    %146 = vmatpush1.msra.mxu0 0.0
    %147 = vmatprep.subr.mxu0 0.0
    %148 = vmatpush1.msra.mxu0 0.0
    %149 = vmatprep.subr.mxu0 0.0
    %150 = vmatpush1.msra.mxu0 0.0
    %151 = vmatprep.subr.mxu0 0.0
    %152 = vmatpush1.msra.mxu0 0.0
    %153 = vmatprep.subr.mxu0 0.0
    %154 = vmatpush1.msra.mxu0 0.0
    %155 = vmatprep.subr.mxu0 0.0
    %156 = vmatpush1.msra.mxu0 0.0
    %157 = vmatprep.subr.mxu0 0.0
    %158 = vmatpush1.msra.mxu0 0.0
    %159 = vmatprep.subr.mxu0 0.0
    %160 = vmatpush1.msra.mxu0 0.0
    %161 = vmatprep.subr.mxu0 0.0
    %162 = vmatpush1.msra.mxu0 0.0
    %163 = vmatprep.subr.mxu0 0.0
    %164 = vmatpush1.msra.mxu0 0.0
    %165 = vmatprep.subr.mxu0 0.0
    %166 = vmatpush1.msra.mxu0 0.0
    %167 = vmatprep.subr.mxu0 0.0
    %168 = vmatpush1.msra.mxu0 0.0
    %169 = vmatprep.subr.mxu0 0.0
    %170 = vmatpush1.msra.mxu0 %v85
    %171 = vmatprep.subr.mxu0 0.0
    %172 = vmatpush1.msra.mxu0 %v84
    %173 = vmatprep.subr.mxu0 0.0
    %174 = vmatpush1.msra.mxu0 %v83
    %175 = vmatprep.subr.mxu0 0.0
    %176 = vmatpush1.msra.mxu0 %v82
    %177 = vmatprep.subr.mxu0 0.0
    %178 = vmatpush2.msra.mxu0 0.0
    %179 = vmatprep.subr.mxu0 0.0
    %180 = vmatpush2.msra.mxu0 0.0
    %181 = vmatprep.subr.mxu0 0.0
    %182 = vmatpush2.msra.mxu0 0.0
    %183 = vmatprep.subr.mxu0 0.0
    %184 = vmatpush2.msra.mxu0 0.0
    %185 = vmatprep.subr.mxu0 0.0
    %186 = vmatpush2.msra.mxu0 0.0
    %187 = vmatprep.subr.mxu0 0.0
    %188 = vmatpush2.msra.mxu0 0.0
    %189 = vmatprep.subr.mxu0 0.0
    %190 = vmatpush2.msra.mxu0 0.0
    %191 = vmatprep.subr.mxu0 0.0
    %192 = vmatpush2.msra.mxu0 0.0
    %193 = vmatprep.subr.mxu0 0.0
    %194 = vmatpush2.msra.mxu0 0.0
    %195 = vmatprep.subr.mxu0 0.0
    %196 = vmatpush2.msra.mxu0 0.0
    %197 = vmatprep.subr.mxu0 0.0
    %198 = vmatpush2.msra.mxu0 0.0
    %199 = vmatprep.subr.mxu0 0.0
    %200 = vmatpush2.msra.mxu0 0.0
    %201 = vmatprep.subr.mxu0 0.0
    %202 = vmatpush2.msra.mxu0 0.0
    %203 = vmatprep.subr.mxu0 0.0
    %204 = vmatpush2.msra.mxu0 0.0
    %205 = vmatprep.subr.mxu0 0.0
    %206 = vmatpush2.msra.mxu0 0.0
    %207 = vmatprep.subr.mxu0 0.0
    %208 = vmatpush2.msra.mxu0 0.0
    %209 = vmatprep.mubr.f32.mxu0 0.0
    %210 = vmatmul.mubr.f32.gmra.mxu0 %v143
    %v211 = vpop.f32.mrf.mxu0
    %v212 = vadd.f32 0.0, %v211
    %v213 = vpop.f32.mrf.mxu0
    %214 = vdwg.mxu0
    %v215 = vadd.f32 %v81, %v212
    %216 = vst [vmem:[#allocation2] sm:$0x3] %v215
    // Predicated region
    $region26: #{tpu_custom_call.1} parent=1 // pred_check
      %p217 = pneg %p43
    $region27: #{tpu_custom_call.1} parent=1 // pred_check_branch
      %219 = sbr.rel (%p217) target = $region29
    $region28: #{tpu_custom_call.1} parent=1 // pred_region
      %v220 = vld [vmem:[#allocation2] sm:$0x3]
      %v221 = vmul.f32 %v220, 0.015625
      %v222 = vld [vmem:[%s2] sm:$0x1]
      %v224 = vlaneseq
      %v225 = vshrl.u32 %v224, 7
      %v226 = vsub.s32 0, %v225
      %v227 = vrot.slane %v222, %v226
      %v229 = vadd.f32 %v221, %v227
      %230 = vst [vmem:[#allocation8] sm:$0x3] %v229
    $region29: #{tpu_custom_call.1} parent=1 // pred_fallthru
      _
    // Predicated region
    $region30: #{tpu_custom_call.1} parent=1 // pred_check
      _
    $region31: #{tpu_custom_call.1} parent=1 // pred_check_branch
      %232 = sbr.rel (0) target = $region33
    $region32: #{tpu_custom_call.1} parent=1 // pred_region
      %s234 = ssub.s32 32, 32
      %235 = vsyncadd [#allocation5], %s234
      %s237 = sshll.u32 [#allocation8], 4
      %s238 = int_to_ptr.vmem [resolvable:$true] %s237
      %240 = dma.vmem_to_hbm [thread:$0]  %s238, 32, %s3, [#allocation5]
    $region33: #{tpu_custom_call.1} parent=1 // pred_fallthru
      _
    // Predicated region
    $region34: #{tpu_custom_call.1} parent=1 // pred_check
      _
    $region35: #{tpu_custom_call.1} parent=1 // pred_check_branch
      %242 = sbr.rel (0) target = $region37
    $region36: #{tpu_custom_call.1} parent=1 // pred_region
      %243 = dma.done [#allocation5], 32
    $region37: #{tpu_custom_call.1} parent=1 // pred_fallthru
      _
    %244 = vsyncpa [#allocation4], 1
    %245 = vsyncpa [#allocation7], 1
    %246 = vsyncpa [#allocation5], 1

</llo_original>
